<compile_context>
chip_gen: v6e
topology: v6e:2x2x1
jax: 0.10.0
libtpu: 0.0.40
codegen_flags: <defaults>
</compile_context>

<pallas_src>
import jax
import jax.numpy as jnp
from jax.experimental import pallas as pl
from jax.experimental.pallas import tpu as pltpu


# ----------------------------------------------------------------------------
# Pallas kernels
# ----------------------------------------------------------------------------
def _mlp_fused_kernel(x_ref, w_ref, o_ref):
    """x: (B*S, K) f32, resident across the grid.
       w: (1, 1, K, ne) bf16 weight tile for this (layer2, head) grid point.
       o: (1, B, 1, S, ne) f32 block of the final (2L, B, nh, S, ne) output."""
    _, B, _, S, _ = o_ref.shape
    x = x_ref[...].astype(jnp.bfloat16)            # tiny tile; cheap VPU cast
    w = w_ref[0, 0]                                # (K, ne) bf16
    acc = jnp.dot(x, w, preferred_element_type=jnp.float32)   # (B*S, ne) f32
    # Split the B*S rows into per-batch (S, ne) slabs and store them into the
    # already-permuted output layout.  B/S are trace-time constants and the
    # slices land on static row offsets, so no reshape/relayout is needed.
    for b in range(B):
        o_ref[0, b, 0, :, :] = acc[b * S:(b + 1) * S, :].astype(o_ref.dtype)


def prefix_mlp_fused(x2d, w4, batch_size, prefix_seq_len):
    """x2d: (B*S, K) f32;  w4: (2L, nh, K, ne) bf16  ->  (2L, B, nh, S, ne) f32."""
    M, K = x2d.shape
    two_l, nh, K2, ne = w4.shape
    assert K == K2 and M == batch_size * prefix_seq_len
    out_shape = jax.ShapeDtypeStruct(
        (two_l, batch_size, nh, prefix_seq_len, ne), jnp.float32
    )
    out_bytes = two_l * batch_size * nh * prefix_seq_len * ne * 4
    cost = pl.CostEstimate(
        flops=2 * M * K * two_l * nh * ne,
        transcendentals=0,
        bytes_accessed=int(
            x2d.size * x2d.dtype.itemsize + w4.size * w4.dtype.itemsize + out_bytes
        ),
    )
    return pl.pallas_call(
        _mlp_fused_kernel,
        out_shape=out_shape,
        grid=(two_l, nh),
        in_specs=[
            # Activation tile: constant block index -> stays resident in VMEM.
            pl.BlockSpec((M, K), lambda l, h: (0, 0)),
            # One lane-dense (K, ne) weight tile per (layer2, head) step;
            # BlockSpec pipelining double-buffers the weight stream.
            pl.BlockSpec((1, 1, K, ne), lambda l, h: (l, h, 0, 0)),
        ],
        # Write the final permuted layout directly (no external 5-D transpose).
        out_specs=pl.BlockSpec(
            (1, batch_size, 1, prefix_seq_len, ne), lambda l, h: (l, 0, h, 0, 0)
        ),
        compiler_params=pltpu.CompilerParams(
            # Independent output tiles: megacore-shard across v7x's two TCs.
            dimension_semantics=("parallel", "parallel"),
            # Explicit scoped-VMEM budget, safe on v7x (64 MiB physical) and far
            # above what the small double-buffered tiles need.
            vmem_limit_bytes=32 * 1024 * 1024,
        ),
        cost_estimate=cost,
    )(x2d, w4)


def _prompt_scale_kernel(scale_ref, p_ref, o_ref):
    # scale_ref: (1,) f32 in SMEM;  p_ref / o_ref: (1, nh, S, ne) per-layer2 block.
    # Matches torch: scale = maximum(ones([]), scales[0]); out = prompts * scale
    s = jnp.maximum(jnp.float32(1.0), scale_ref[0])
    o_ref[...] = (p_ref[...] * s).astype(o_ref.dtype)


def prefix_prompt_scale(prompts4, scales):
    """prompts4: (2L, nh, S, ne) head-major table, scales: (1,) -> scaled table."""
    two_l, nh, S, ne = prompts4.shape
    return pl.pallas_call(
        _prompt_scale_kernel,
        out_shape=jax.ShapeDtypeStruct((two_l, nh, S, ne), prompts4.dtype),
        grid=(two_l,),
        in_specs=[
            # Scalar lives in SMEM (no masked (1,1) vector load in VMEM).
            pl.BlockSpec(memory_space=pltpu.MemorySpace.SMEM),
            # Per-layer2 tile: keeps VMEM flat for real (large) configs and
            # pipelines load / scale / store.
            pl.BlockSpec((1, nh, S, ne), lambda l: (l, 0, 0, 0)),
        ],
        out_specs=pl.BlockSpec((1, nh, S, ne), lambda l: (l, 0, 0, 0)),
        compiler_params=pltpu.CompilerParams(
            dimension_semantics=("parallel",),
            vmem_limit_bytes=32 * 1024 * 1024,
        ),
    )(scales.astype(jnp.float32), prompts4)


# ----------------------------------------------------------------------------
# Module-equivalent wrapper (remaining glue is zero-FLOP layout work in JAX)
# ----------------------------------------------------------------------------
class PrefixEncoderMHAPallas:
    def __init__(
        self,
        zdim,
        hidden_size,
        num_attention_heads,
        ztokens,
        shallow_decoder_n_layer,
        prefix_generator,
        key,
    ):
        self.input_dim = zdim
        self.hidden_dim = hidden_size
        self.prefix_seq_len = ztokens
        self.match_n_layer = shallow_decoder_n_layer
        self.prefix_generator = prefix_generator
        self.match_n_head = num_attention_heads
        self.match_n_embd = hidden_size // num_attention_heads

        L, nh, ne = self.match_n_layer, self.match_n_head, self.match_n_embd
        k_mlp, k_prompt = jax.random.split(key, 2)
        if prefix_generator == "mlp":
            # nn.Linear(zdim, 2*L*H, bias=False): weight shape (out, in).
            out_dim = 2 * L * hidden_size
            w = jax.random.normal(k_mlp, (out_dim, zdim), jnp.float32) * 0.02
            # Pre-lay-out ONCE at init into (2L, nh, K, ne), stored as bf16:
            # w4[l2, h, k, e] == W[l2*H + h*ne + e, k]
            self.w4 = (
                w.reshape(2 * L, nh, ne, zdim)
                .transpose(0, 1, 3, 2)
                .astype(jnp.bfloat16)
            )
        else:
            # nn.Parameter(torch.ones([1])) -- set >1 here to exercise the max.
            self.scales = jnp.full((1,), 1.5, jnp.float32)
            # nn.Parameter(torch.empty([2L, num_prompts, H])), xavier-uniform-ish.
            shape = (2 * L, self.prefix_seq_len, hidden_size)
            bound = (6.0 / (self.prefix_seq_len + hidden_size)) ** 0.5
            self.prompts = jax.random.uniform(
                k_prompt, shape, jnp.float32, minval=-bound, maxval=bound
            )
            # Head-major layout once at init: (2L, nh, S, ne).
            self.prompts4 = self.prompts.reshape(
                2 * L, self.prefix_seq_len, nh, ne
            ).transpose(0, 2, 1, 3)

    def __call__(self, input_embd):
        B = input_embd.shape[0]
        L, nh, ne = self.match_n_layer, self.match_n_head, self.match_n_embd
        S = self.prefix_seq_len

        if self.prefix_generator == "mlp":
            x2d = input_embd.reshape(B * S, self.input_dim)
            # Kernel emits the final (2L, B, nh, S, ne) layout directly.
            pkv = prefix_mlp_fused(x2d, self.w4, B, S)
            return tuple((pkv[2 * j], pkv[2 * j + 1]) for j in range(L))
        else:
            # Scale the small head-major table in Pallas, then broadcast over
            # batch last (smallest possible layout traffic).
            scaled4 = prefix_prompt_scale(self.prompts4, self.scales)  # (2L,nh,S,ne)
            out = ()
            for j in range(L):
                k = jnp.broadcast_to(scaled4[2 * j][None], (B, nh, S, ne))
                v = jnp.broadcast_to(scaled4[2 * j + 1][None], (B, nh, S, ne))
                out += ((k, v),)
            return out


# ----------------------------------------------------------------------------
# Pure-JAX reference for correctness check
# ----------------------------------------------------------------------------
def _reference(enc, input_embd):
    B = input_embd.shape[0]
    L, nh, ne = enc.match_n_layer, enc.match_n_head, enc.match_n_embd
    S, H = enc.prefix_seq_len, enc.hidden_dim
    if enc.prefix_generator == "mlp":
        w4f = enc.w4.astype(jnp.float32)  # (2L, nh, K, ne)
        pkv = jnp.einsum(
            "bsk,lhke->lbhse", input_embd, w4f, precision=jax.lax.Precision.HIGHEST
        )
        return tuple((pkv[2 * j], pkv[2 * j + 1]) for j in range(L))
    else:
        scale = jnp.maximum(1.0, enc.scales[0])
        out = ()
        for j in range(L):
            k = (enc.prompts[2 * j] * scale)[None]
            v = (enc.prompts[2 * j + 1] * scale)[None]
            k = jnp.broadcast_to(k, (B, S, H)).reshape(B, S, nh, ne).transpose(0, 2, 1, 3)
            v = jnp.broadcast_to(v, (B, S, H)).reshape(B, S, nh, ne).transpose(0, 2, 1, 3)
            out += ((k, v),)
        return out


if __name__ == "__main__":
    # Small, module-consistent config.
    batch = 2
    zdim = 32               # config.zdim
    hidden_size = 32        # config.hidden_size
    num_heads = 4           # config.num_attention_heads
    ztokens = 8             # config.ztokens / task_ztokens  (prefix_seq_len)
    n_layer = 2             # model_args.shallow_decoder_n_layer

    key = jax.random.PRNGKey(0)
    k_param, k_input = jax.random.split(key)

    # input_embd: (batch, prefix_seq_len, zdim)
    input_embd = jax.random.normal(k_input, (batch, ztokens, zdim), jnp.float32)

    ok = True
    for gen in ("mlp", "prompts"):
        enc = PrefixEncoderMHAPallas(
            zdim, hidden_size, num_heads, ztokens, n_layer, gen, k_param
        )
        out = jax.block_until_ready(enc(input_embd))
        ref = _reference(enc, input_embd)
        # bf16 weight stream on the mlp path -> slightly looser tolerance there.
        atol, rtol = (2e-2, 2e-2) if gen == "mlp" else (1e-5, 1e-5)
        for (k_p, v_p), (k_r, v_r) in zip(out, ref):
            assert k_p.shape == (batch, num_heads, ztokens, hidden_size // num_heads)
            assert v_p.shape == (batch, num_heads, ztokens, hidden_size // num_heads)
            ok &= bool(jnp.allclose(k_p, k_r, atol=atol, rtol=rtol))
            ok &= bool(jnp.allclose(v_p, v_r, atol=atol, rtol=rtol))

    if ok:
        print("KERNEL_OK")
    else:
        print("KERNEL_MISMATCH")
</pallas_src>

<mosaic_0001>
module attributes {stable_mosaic.version = 11 : i64} {
  func.func @_mlp_fused_kernel(%arg0: i32, %arg1: i32, %arg2: memref<16x32xf32, #tpu.memory_space<vmem>>, %arg3: memref<1x1x32x8xbf16, #tpu.memory_space<vmem>>, %arg4: memref<1x2x1x8x8xf32, #tpu.memory_space<vmem>>) attributes {dimension_semantics = [#tpu.dimension_semantics<parallel>, #tpu.dimension_semantics<parallel>], iteration_bounds = array<i64: 4, 4>, scalar_prefetch = 0 : i64, scratch_operands = 0 : i64, tpu.core_type = #tpu.core_type<tc>, window_params = [{pipeline_mode = #tpu.pipeline_mode<synchronous>, transform_indices = @transform_0, window_bounds = array<i64: 16, 32>}, {transform_indices = @transform_1, window_bounds = array<i64: 1, 1, 32, 8>}, {transform_indices = @transform_2, window_bounds = array<i64: 1, 2, 1, 8, 8>}]} {
    %c0 = arith.constant 0 : index
    %c0_0 = arith.constant 0 : index
    %0 = vector.load %arg2[%c0, %c0_0] : memref<16x32xf32, #tpu.memory_space<vmem>>, vector<16x32xf32>
    %1 = arith.truncf %0 : vector<16x32xf32> to vector<16x32xbf16>
    %c0_1 = arith.constant 0 : index
    %c0_2 = arith.constant 0 : index
    %c0_3 = arith.constant 0 : index
    %c0_4 = arith.constant 0 : index
    %2 = vector.load %arg3[%c0_1, %c0_2, %c0_3, %c0_4] : memref<1x1x32x8xbf16, #tpu.memory_space<vmem>>, vector<1x1x32x8xbf16>
    %3 = vector.shape_cast %2 : vector<1x1x32x8xbf16> to vector<32x8xbf16>
    %cst = arith.constant dense<0.000000e+00> : vector<16x8xf32>
    %4 = tpu.matmul %1, %3, %cst {dimension_numbers = #tpu.dot_dimension_numbers<[1], [0], [0], [1], [0, 0, 1, 1], [], []>} : vector<16x32xbf16>, vector<32x8xbf16>, vector<16x8xf32> -> vector<16x8xf32>
    %5 = vector.extract_strided_slice %4 {offsets = [0, 0], sizes = [8, 8], strides = [1, 1]} : vector<16x8xf32> to vector<8x8xf32>
    %c0_5 = arith.constant 0 : index
    %c0_6 = arith.constant 0 : index
    %c0_7 = arith.constant 0 : index
    %c0_8 = arith.constant 0 : index
    %c0_9 = arith.constant 0 : index
    %6 = vector.load %arg4[%c0_5, %c0_6, %c0_7, %c0_8, %c0_9] : memref<1x2x1x8x8xf32, #tpu.memory_space<vmem>>, vector<1x1x1x8x8xf32>
    %7 = vector.shape_cast %6 : vector<1x1x1x8x8xf32> to vector<8x8xf32>
    %8 = vector.shape_cast %5 : vector<8x8xf32> to vector<1x1x1x8x8xf32>
    tpu.vector_store %arg4[%c0_5, %c0_6, %c0_7, %c0_8, %c0_9], %8 {strides = array<i32>} : memref<1x2x1x8x8xf32, #tpu.memory_space<vmem>>, vector<1x1x1x8x8xf32>,
    %9 = vector.extract_strided_slice %4 {offsets = [8, 0], sizes = [8, 8], strides = [1, 1]} : vector<16x8xf32> to vector<8x8xf32>
    %c0_10 = arith.constant 0 : index
    %c1 = arith.constant 1 : index
    %c0_11 = arith.constant 0 : index
    %c0_12 = arith.constant 0 : index
    %c0_13 = arith.constant 0 : index
    %10 = vector.load %arg4[%c0_10, %c1, %c0_11, %c0_12, %c0_13] : memref<1x2x1x8x8xf32, #tpu.memory_space<vmem>>, vector<1x1x1x8x8xf32>
    %11 = vector.shape_cast %10 : vector<1x1x1x8x8xf32> to vector<8x8xf32>
    %12 = vector.shape_cast %9 : vector<8x8xf32> to vector<1x1x1x8x8xf32>
    tpu.vector_store %arg4[%c0_10, %c1, %c0_11, %c0_12, %c0_13], %12 {strides = array<i32>} : memref<1x2x1x8x8xf32, #tpu.memory_space<vmem>>, vector<1x1x1x8x8xf32>,
    return
  }
  func.func @transform_0(%arg0: i32, %arg1: i32) -> (i32, i32) {
    %c0_i32 = arith.constant 0 : i32
    %c0_i32_0 = arith.constant 0 : i32
    %c0_i32_1 = arith.constant 0 : i32
    return %c0_i32, %c0_i32_0 : i32, i32
  }
  func.func @transform_1(%arg0: i32, %arg1: i32) -> (i32, i32, i32, i32) {
    %c0_i32 = arith.constant 0 : i32
    %c0_i32_0 = arith.constant 0 : i32
    %c0_i32_1 = arith.constant 0 : i32
    return %arg0, %arg1, %c0_i32, %c0_i32_0 : i32, i32, i32, i32
  }
  func.func @transform_2(%arg0: i32, %arg1: i32) -> (i32, i32, i32, i32, i32) {
    %c0_i32 = arith.constant 0 : i32
    %c0_i32_0 = arith.constant 0 : i32
    %c0_i32_1 = arith.constant 0 : i32
    %c0_i32_2 = arith.constant 0 : i32
    return %arg0, %c0_i32, %arg1, %c0_i32_0, %c0_i32_1 : i32, i32, i32, i32, i32
  }
}

</mosaic_0001>

<llo_original>
// kernel: tpu_custom_call.1
$region0: #{tpu_custom_call.1}
  #allocation0 [shape = 'u32[]', space=smem, size = 0x4, offset = 0x4, fixed_abs, tag = 'smem constant byte address 0x4 - core index']
  #allocation1 [shape = 'u32[144,128]{1,0:T(1,128)}', space=vmem, size = 0x12000, scoped, tag = 'internal scratch']
  %s0 = inlined_call_operand.vmem [shape: f32[16,32], index: 0, kind: input, shape index: {}]
  %s1 = inlined_call_operand.vmem [shape: bf16[4,4,32,8], index: 1, kind: input, shape index: {}]
  %s2 = inlined_call_operand.hbm [shape: f32[4,2,4,8,8], index: 2, kind: output, shape index: {}]
  %s3 = sld [smem:[#allocation0]]
  $region41: #{tpu_custom_call.1} parent=0
    _
  %s5 = ssub.s32 1, %s3
  %s6 = scalar_select 0, %s5, %s3
  $region1: #{tpu_custom_call.1} parent=0
    #allocation2 [shape = 'u8[16384]{0}', space=vmem, size = 0x4000, scoped, tag = 'output window, operand 0']
    #allocation3 [shape = 's32[2]{0}', space=sflag, size = 0x8, scoped, tag = 'scoped memory for tpu_custom_call.1']
    %7 = vsyncpa [#allocation3], 0
    %s8 = scalar_lea.sflag [#allocation3], 1
    %9 = vsyncpa %s8, 0
    loop: start=0, step=1, limit=18
    $region2: #{tpu_custom_call.1} parent=1 // loop_pre_header
      _
    $region3: #{tpu_custom_call.1} parent=1 // loop_header
      %s11 = sphi 0, %s15
      %p12 = scmp.ge.s32.totalorder %s11, 18
      %s18 = sphi 0, %s30
      %s19 = sphi 0, %s26
      %s20 = sphi 0, %s18
      %s21 = sphi 0, %s19
      %s22 = sphi 0, %s20
      %s23 = sphi 0, %s21
      %s31 = sphi 0, %s31
      %s33 = sphi 0, %s31
      %s34 = sphi 0, %s33
      %s48 = sphi 0, %s34
      %s56 = sphi 0, %s58
      %s59 = sphi 0, %s56
      %s60 = sphi 0, %s59
      %s76 = sphi 0, %s60
      %s84 = sphi 0, %s86
      %s87 = sphi 0, %s84
      %s88 = sphi 0, %s87
      %s104 = sphi 0, %s88
    $region4: #{tpu_custom_call.1} parent=1 // loop_header_branch
      %14 = sbr.rel (%p12) target = $region8
    $region5: #{tpu_custom_call.1} parent=1 // loop_body
      %s16 = ssub.s32 %s11, 1
      %s17 = ssub.s32 %s11, 2
      %s24 = sadd.s32 1, %s19
      %p25 = scmp.ge.s32.totalorder %s24, 4
      %s26 = scalar_select %p25, 0, %s24
      %s27 = sadd.s32 1, %s18
      %s28 = scalar_select %p25, %s27, %s18
      %p29 = scmp.ge.s32.totalorder %s28, 4
      %s30 = scalar_select %p29, 0, %s28
      %s32 = sadd.s32 %s31, 1
      %p35 = scmp.eq.s32.totalorder %s11, 15
      %p36 = scmp.ne.s32.totalorder %s31, %s33
      %p37 = scmp.eq.s32.totalorder %s11, 0
      %p38 = por %p36, %p37
      %p39 = scmp.ne.s32.totalorder %s31, %s33
      %p40 = scmp.eq.s32.totalorder %s16, 15
      %p41 = por %p39, %p40
      %p42 = scmp.ne.s32.totalorder %s33, %s34
      %p43 = scmp.eq.s32.totalorder %s16, 0
      %p44 = por %p42, %p43
      %p45 = scmp.ne.s32.totalorder %s33, %s34
      %p46 = scmp.eq.s32.totalorder %s17, 15
      %p47 = por %p45, %p46
      %p49 = scmp.ne.s32.totalorder %s34, %s48
      %p50 = scmp.eq.s32.totalorder %s17, 0
      %p51 = por %p49, %p50
      %s52 = ssub.s32 %s18, %s30
      %s53 = ssub.s32 %s19, %s26
      %s54 = sor.u32 %s52, %s53
      %p55 = scmp.eq.s32.totalorder %s54, 0
      %s57 = sadd.s32 %s56, 1
      %s58 = scalar_select %p55, %s56, %s57
      %p61 = pneg %p55
      %p62 = scmp.eq.s32.totalorder %s11, 15
      %p63 = por %p61, %p62
      %p64 = scmp.ne.s32.totalorder %s56, %s59
      %p65 = scmp.eq.s32.totalorder %s11, 0
      %p66 = por %p64, %p65
      %p67 = scmp.ne.s32.totalorder %s56, %s59
      %p68 = scmp.eq.s32.totalorder %s16, 15
      %p69 = por %p67, %p68
      %p70 = scmp.ne.s32.totalorder %s59, %s60
      %p71 = scmp.eq.s32.totalorder %s16, 0
      %p72 = por %p70, %p71
      %p73 = scmp.ne.s32.totalorder %s59, %s60
      %p74 = scmp.eq.s32.totalorder %s17, 15
      %p75 = por %p73, %p74
      %p77 = scmp.ne.s32.totalorder %s60, %s76
      %p78 = scmp.eq.s32.totalorder %s17, 0
      %p79 = por %p77, %p78
      %s80 = ssub.s32 %s18, %s30
      %s81 = ssub.s32 %s19, %s26
      %s82 = sor.u32 %s80, %s81
      %p83 = scmp.eq.s32.totalorder %s82, 0
      %s85 = sadd.s32 %s84, 1
      %s86 = scalar_select %p83, %s84, %s85
      %p89 = pneg %p83
      %p90 = scmp.eq.s32.totalorder %s11, 15
      %p91 = por %p89, %p90
      %p92 = scmp.ne.s32.totalorder %s84, %s87
      %p93 = scmp.eq.s32.totalorder %s11, 0
      %p94 = por %p92, %p93
      %p95 = scmp.ne.s32.totalorder %s84, %s87
      %p96 = scmp.eq.s32.totalorder %s16, 15
      %p97 = por %p95, %p96
      %p98 = scmp.ne.s32.totalorder %s87, %s88
      %p99 = scmp.eq.s32.totalorder %s16, 0
      %p100 = por %p98, %p99
      %p101 = scmp.ne.s32.totalorder %s87, %s88
      %p102 = scmp.eq.s32.totalorder %s17, 15
      %p103 = por %p101, %p102
      %p105 = scmp.ne.s32.totalorder %s88, %s104
      %p106 = scmp.eq.s32.totalorder %s17, 0
      %p107 = por %p105, %p106
      %p108 = scmp.le.s32.totalorder 1, %s11
      %p109 = scmp.lt.s32.totalorder %s11, 17
      %p110 = pnand %p108, %p109
      %p111 = pneg %p110
      // Predicated region
      $region9: #{tpu_custom_call.1} parent=5 // pred_check
        _
      $region10: #{tpu_custom_call.1} parent=5 // pred_check_branch
        %113 = sbr.rel (%p110) target = $region12
      $region11: #{tpu_custom_call.1} parent=5 // pred_region
        %s114 = ssub.s32 %s11, 1
        // Predicated region
        $region13: #{tpu_custom_call.1} parent=11 // pred_check
          %p115 = pneg %p44
        $region14: #{tpu_custom_call.1} parent=11 // pred_check_branch
          %117 = sbr.rel (%p115) target = $region16
        $region15: #{tpu_custom_call.1} parent=11 // pred_region
          _
        $region16: #{tpu_custom_call.1} parent=11 // pred_fallthru
          _
      $region12: #{tpu_custom_call.1} parent=5 // pred_fallthru
        _
      %p118 = scmp.lt.s32.totalorder %s11, 16
      // Predicated region
      $region17: #{tpu_custom_call.1} parent=5 // pred_check
        %p119 = pneg %p118
      $region18: #{tpu_custom_call.1} parent=5 // pred_check_branch
        %121 = sbr.rel (%p119) target = $region20
      $region19: #{tpu_custom_call.1} parent=5 // pred_region
        // Predicated region
        $region21: #{tpu_custom_call.1} parent=19 // pred_check
          %p122 = pneg %p66
        $region22: #{tpu_custom_call.1} parent=19 // pred_check_branch
          %124 = sbr.rel (%p122) target = $region24
        $region23: #{tpu_custom_call.1} parent=19 // pred_region
          %p125 = scmp.lt.s32.totalorder %s18, 3
          %s126 = scalar_select %p125, %s18, 3
          %p127 = scmp.lt.s32.totalorder %s19, 3
          %s128 = scalar_select %p127, %s19, 3
          %s129 = smul.addr %s128, 4
          %s130 = smul.addr %s126, 16
          %s131 = sadd.s32 %s129, %s130
          %s132 = smul.addr %s131, 4
          %s133 = scalar_lea.vmem %s1, %s132
        $region24: #{tpu_custom_call.1} parent=19 // pred_fallthru
          _
      $region20: #{tpu_custom_call.1} parent=5 // pred_fallthru
        _
      %p134 = scmp.le.s32.totalorder 1, %s11
      %p135 = scmp.lt.s32.totalorder %s11, 17
      %p136 = pnand %p134, %p135
      %p137 = pneg %p136
      // Predicated region
      $region25: #{tpu_custom_call.1} parent=5 // pred_check
        _
      $region26: #{tpu_custom_call.1} parent=5 // pred_check_branch
        %139 = sbr.rel (%p136) target = $region28
      $region27: #{tpu_custom_call.1} parent=5 // pred_region
        %s140 = ssub.s32 %s11, 1
        %p141 = pneg %p44
        %p142 = pneg %p41
        %p143 = scmp.lt.s32.totalorder %s20, 3
        %s144 = scalar_select %p143, %s20, 3
        %p145 = scmp.lt.s32.totalorder %s21, 3
        %s146 = scalar_select %p145, %s21, 3
        %s147 = smul.addr %s146, 4
        %s148 = smul.addr %s144, 16
        %s149 = sadd.s32 %s147, %s148
        %s150 = smul.addr %s149, 4
        %s151 = scalar_lea.vmem %s1, %s150
        %p152 = pneg %p72
        %p153 = pneg %p69
        %p154 = pneg %p100
        %p155 = pneg %p97
        %s156 = sand.u32 %s87, 1
        %s157 = scalar_lea.sflag [#allocation3], %s156
        %s158 = sand.u32 %s87, 1
        %s159 = smul.addr %s158, 16
        %s160 = scalar_lea.vmem [#allocation2], %s159
        %p161 = scmp.lt.s32.totalorder %s20, 3
        %s162 = scalar_select %p161, %s20, 3
        %p163 = scmp.lt.s32.totalorder %s21, 3
        %s164 = scalar_select %p163, %s21, 3
        %s165 = smul.addr %s164, 4
        %s166 = smul.addr %s162, 16
        %s167 = sadd.s32 %s165, %s166
        %s168 = smul.addr %s167, 4
        %s169 = scalar_lea.vmem %s1, %s168
        %v171 = vld [vmem:[%s0] sm:$0xff]
        %v172 = vld [vmem:[%s0 + $0x8] sm:$0xff]
        %v173 = vpack.c.bf16 %v172, %v171
        %v174 = vld [vmem:[%s169] sm:$0xf]
        %v175 = vld [vmem:[%s169 + $0x4] sm:$0xf]
        %v176 = vld [vmem:[%s169 + $0x8] sm:$0xf]
        %v177 = vld [vmem:[%s169 + $0xc] sm:$0xf]
        %v182 = vunpack.c.l.b16 %v174
        %v183 = vunpack.c.l.b16 %v175
        %v184 = vunpack.c.l.b16 %v176
        %v185 = vunpack.c.l.b16 %v177
        %v186 = vpack.c.b16 %v183, %v182
        %v187 = vpack.c.b16 %v185, %v184
        %vm190 = vcmask 261120
        %v192 = vsel %vm190, %v173, 0
        %194 = vmatprep.subr.bf16.mxu0 0
        %195 = vmatpush1.bf16.msra.mxu0 0
        %196 = vmatprep.subr.bf16.mxu0 0
        %197 = vmatpush1.bf16.msra.mxu0 0
        %198 = vmatprep.subr.bf16.mxu0 0
        %199 = vmatpush1.bf16.msra.mxu0 0
        %200 = vmatprep.subr.bf16.mxu0 0
        %201 = vmatpush1.bf16.msra.mxu0 0
        %202 = vmatprep.subr.bf16.mxu0 0
        %203 = vmatpush1.bf16.msra.mxu0 0
        %204 = vmatprep.subr.bf16.mxu0 0
        %205 = vmatpush1.bf16.msra.mxu0 0
        %206 = vmatprep.subr.bf16.mxu0 0
        %207 = vmatpush1.bf16.msra.mxu0 %v187
        %208 = vmatprep.subr.bf16.mxu0 0
        %209 = vmatpush1.bf16.msra.mxu0 %v186
        %210 = vmatprep.subr.bf16.mxu0 0
        %211 = vmatpush2.bf16.msra.mxu0 0
        %212 = vmatprep.subr.bf16.mxu0 0
        %213 = vmatpush2.bf16.msra.mxu0 0
        %214 = vmatprep.subr.bf16.mxu0 0
        %215 = vmatpush2.bf16.msra.mxu0 0
        %216 = vmatprep.subr.bf16.mxu0 0
        %217 = vmatpush2.bf16.msra.mxu0 0
        %218 = vmatprep.subr.bf16.mxu0 0
        %219 = vmatpush2.bf16.msra.mxu0 0
        %220 = vmatprep.subr.bf16.mxu0 0
        %221 = vmatpush2.bf16.msra.mxu0 0
        %222 = vmatprep.subr.bf16.mxu0 0
        %223 = vmatpush2.bf16.msra.mxu0 0
        %224 = vmatprep.subr.bf16.mxu0 0
        %225 = vmatpush2.bf16.msra.mxu0 0
        %226 = vmatprep.mubr.bf16.mxu0 0
        %227 = vmatmul.mubr.bf16.gmra.mxu0 %v192
        %v228 = vpop.f32.mrf.mxu0
        %v229 = vadd.f32 0.0, %v228
        %v230 = vpop.f32.mrf.mxu0
        %v231 = vpop.f32.mrf.mxu0
        %v232 = vadd.f32 0.0, %v231
        %v233 = vpop.f32.mrf.mxu0
        %234 = vdwg.mxu0
        %vm235 = vcmask 64512
        %236 = vst.msk [vmem:[%s160] sm:$0xff] %vm235, %v229
        %s237 = scalar_lea.vmem %s160, 8 [#allocation2]
        %238 = vst.msk [vmem:[%s237] sm:$0xff] %vm235, %v232
        %s239 = sand.u32 %s87, 1
        %s240 = scalar_lea.sflag [#allocation3], %s239
        %s241 = sand.u32 %s87, 1
        %s242 = smul.addr %s241, 16
        %s243 = scalar_lea.vmem [#allocation2], %s242
        // Predicated region
        $region29: #{tpu_custom_call.1} parent=27 // pred_check
          %p244 = pneg %p97
        $region30: #{tpu_custom_call.1} parent=27 // pred_check_branch
          %246 = sbr.rel (%p244) target = $region32
        $region31: #{tpu_custom_call.1} parent=27 // pred_region
          %s248 = ssub.s32 256, 256
          %249 = vsyncadd %s240, %s248
          %s250 = smul.addr %s20, 8
          %s251 = sadd.s32 %s21, %s250
          %s252 = smul.addr %s251, 128
          %s253 = scalar_lea.hbm %s2, %s252
          %s254 = sshll.u32 %s243, 4
          %s255 = int_to_ptr.vmem [resolvable:$true] %s254
          %260 = dma.vmem_to_hbm [thread:$0]  %s255, 256, %s253, %s240, 128, 512, 8
        $region32: #{tpu_custom_call.1} parent=27 // pred_fallthru
          _
      $region28: #{tpu_custom_call.1} parent=5 // pred_fallthru
        _
      %p261 = scmp.le.s32.totalorder 2, %s11
      // Predicated region
      $region33: #{tpu_custom_call.1} parent=5 // pred_check
        %p262 = pneg %p261
      $region34: #{tpu_custom_call.1} parent=5 // pred_check_branch
        %264 = sbr.rel (%p262) target = $region36
      $region35: #{tpu_custom_call.1} parent=5 // pred_region
        %s265 = ssub.s32 %s11, 2
        // Predicated region
        $region37: #{tpu_custom_call.1} parent=35 // pred_check
          %p266 = pneg %p103
        $region38: #{tpu_custom_call.1} parent=35 // pred_check_branch
          %268 = sbr.rel (%p266) target = $region40
        $region39: #{tpu_custom_call.1} parent=35 // pred_region
          %s269 = sand.u32 %s88, 1
          %s270 = scalar_lea.sflag [#allocation3], %s269
          %s271 = sand.u32 %s88, 1
          %s272 = smul.addr %s271, 16
          %s273 = scalar_lea.vmem [#allocation2], %s272
          %274 = dma.done %s270, 256
        $region40: #{tpu_custom_call.1} parent=35 // pred_fallthru
          _
      $region36: #{tpu_custom_call.1} parent=5 // pred_fallthru
        _
    $region6: #{tpu_custom_call.1} parent=1 // loop_footer
      %s15 = sadd.s32 1, %s11
    $region7: #{tpu_custom_call.1} parent=1 // loop_footer_branch
      %10 = sbr.rel target = $region3
    $region8: #{tpu_custom_call.1} parent=1 // loop_exit
      _
    %275 = vsyncpa [#allocation3], 1
    %s276 = scalar_lea.sflag [#allocation3], 1
    %277 = vsyncpa %s276, 1

</llo_original>
